<compile_context>
chip_gen: v7x
topology: tpu7x:2x2x1
jax: 0.10.0
libtpu: 0.0.40
codegen_flags: <defaults>
</compile_context>

<pallas_src>
import jax
import jax.numpy as jnp
from jax.experimental import pallas as pl
from jax.experimental.pallas import tpu as pltpu


def _round_up(x, m):
    return ((x + m - 1) // m) * m


# ----------------------------------------------------------------------------
# Per-generation hardware configuration (review: tm / ts / vmem_limit per chip)
# ----------------------------------------------------------------------------
_HW_CACHE = {}


def _hw_config():
    if "cfg" in _HW_CACHE:
        return _HW_CACHE["cfg"]
    vmem_phys = 128 * 1024 * 1024
    try:
        vmem_phys = int(pltpu.get_tpu_info().vmem_capacity_bytes)
    except Exception:
        pass
    kind = ""
    try:
        kind = jax.devices()[0].device_kind.lower()
    except Exception:
        pass
    if vmem_phys <= 64 * 1024 * 1024:
        # v7x-class: 64 MiB physical VMEM, 2 TensorCores.  Conservative budget; the
        # grid-invariant FFNN weights are single-copy VMEM-resident so tm=256 fits.
        cfg = dict(vmem_limit=48 * 1024 * 1024, ffnn_tm=256, merge_ts=256,
                   two_cores=True)
    elif "v5" in kind:
        # v5e: 4x128 MXU, 128 MiB VMEM, single TC -> medium row tiles, generous budget.
        cfg = dict(vmem_limit=100 * 1024 * 1024, ffnn_tm=256, merge_ts=256,
                   two_cores=False)
    else:
        # v6e (default): 2x256 MXU, 128 MiB VMEM, single TC -> biggest row tiles.
        cfg = dict(vmem_limit=100 * 1024 * 1024, ffnn_tm=512, merge_ts=512,
                   two_cores=False)
    _HW_CACHE["cfg"] = cfg
    return cfg


# ----------------------------------------------------------------------------
# Pallas kernel 1: fused subword-merge matmul + word-length scaling
#   out[b, i, :] = (mask_sel[b, i, :] @ hidden[b]) * inv_word_len[b, i]
# bf16 MXU inputs, f32 accumulate, f32 reciprocal-multiply epilogue, bf16 store.
# ----------------------------------------------------------------------------
def _merge_rows_kernel(mask_ref, hid_ref, inv_wl_ref, o_ref):
    acc = jnp.dot(mask_ref[...], hid_ref[...], preferred_element_type=jnp.float32)
    # (ts, 1) reciprocal broadcast-multiply: free filler under the MXU (no divide).
    o_ref[...] = (acc * inv_wl_ref[...]).astype(o_ref.dtype)


def merge_and_scale(mask_sel, hidden, inv_word_len):
    """mask_sel: (B, S_word, S_bert) bf16, hidden: (B, S_bert, D) bf16,
    inv_word_len: (B, S_word, 1) f32  ->  (B, S_word, D) bf16."""
    hw = _hw_config()
    B, Sw, Sb = mask_sel.shape
    D = hidden.shape[-1]
    ts = Sw if Sw <= hw["merge_ts"] else hw["merge_ts"]
    # v7x megacore: with B == 1 make sure the row axis has >= 2 grid steps
    # (keep ts a multiple of 8 so the (8,128) block constraint holds).
    if hw["two_cores"] and B == 1:
        while ts >= 16 and ts % 16 == 0 and pl.cdiv(Sw, ts) < 2:
            ts //= 2

    flops = 2 * B * Sw * Sb * D + B * Sw * D
    bytes_accessed = 2 * B * (Sw * Sb + Sb * D + Sw * D) + 4 * B * Sw

    # TODO(synk): for very large Sb*D on v7x, single-buffer the hidden operand
    # (pipeline_mode=pl.Buffered(1)) or add an "arbitrary" K grid axis with an f32
    # accumulator; bf16 already halves its footprint here.
    return pl.pallas_call(
        _merge_rows_kernel,
        out_shape=jax.ShapeDtypeStruct((B, Sw, D), jnp.bfloat16),
        grid=(B, pl.cdiv(Sw, ts)),
        in_specs=[
            pl.BlockSpec((None, ts, Sb), lambda b, i: (b, i, 0)),
            pl.BlockSpec((None, Sb, D), lambda b, i: (b, 0, 0)),
            pl.BlockSpec((None, ts, 1), lambda b, i: (b, i, 0)),
        ],
        out_specs=pl.BlockSpec((None, ts, D), lambda b, i: (b, i, 0)),
        compiler_params=pltpu.CompilerParams(
            dimension_semantics=("parallel", "parallel"),
            vmem_limit_bytes=hw["vmem_limit"],
        ),
        cost_estimate=pl.CostEstimate(flops=flops, transcendentals=0,
                                      bytes_accessed=bytes_accessed),
    )(mask_sel, hidden, inv_word_len)


# ----------------------------------------------------------------------------
# Pallas kernel 2: 3-layer FFNN  (Linear -> ReLU -> Linear -> ReLU -> Linear)
# Matmul inputs bf16 (f32 accumulate); bias add and ReLU in f32.  Dropout = identity.
# Weights/biases are whole-array VMEM-resident (single copy, no per-step DMA).
# ----------------------------------------------------------------------------
def _ffnn3_kernel(x_ref, w1_ref, b1_ref, w2_ref, b2_ref, w3_ref, b3_ref, o_ref):
    x = x_ref[...]                                                       # bf16
    h = jnp.dot(x, w1_ref[...], preferred_element_type=jnp.float32) + b1_ref[...]
    h = jnp.maximum(h, 0.0)
    h = jnp.dot(h.astype(jnp.bfloat16), w2_ref[...],
                preferred_element_type=jnp.float32) + b2_ref[...]
    h = jnp.maximum(h, 0.0)
    o_ref[...] = jnp.dot(h.astype(jnp.bfloat16), w3_ref[...],
                         preferred_element_type=jnp.float32) + b3_ref[...]


def ffnn3(x2d, w1, b1, w2, b2, w3, b3):
    """x2d: (N, Din) bf16/f32; weights stored as (in, out). Returns (N, C) f32.

    Row tile tm picked per generation; class head zero-padded to a multiple of 128
    lanes so the output store is unmasked/lane-dense; padding sliced off on return.
    """
    hw = _hw_config()
    n, din = x2d.shape
    h = w1.shape[1]
    c = w3.shape[1]
    c_pad = _round_up(c, 128)

    tm = hw["ffnn_tm"]
    # v7x megacore: guarantee >= 2 grid steps so both TensorCores get work.
    if hw["two_cores"]:
        while tm > 128 and _round_up(n, tm) // tm < 2:
            tm //= 2
    n_pad = _round_up(n, tm)

    xp = jnp.pad(x2d.astype(jnp.bfloat16), ((0, n_pad - n), (0, 0)))
    w3p = jnp.pad(w3, ((0, 0), (0, c_pad - c)))
    b3p = jnp.pad(b3, (0, c_pad - c))

    # Grid-invariant operands: whole array resident in VMEM for the kernel duration
    # (single copy, no double-buffering) -- the review's single-buffering request.
    wspec = pl.BlockSpec(memory_space=pltpu.MemorySpace.VMEM)

    flops = 2 * n_pad * (din * h + h * h + h * c_pad)
    bytes_accessed = (n_pad * din * 2                       # activations in (bf16)
                      + (din * h + h * h + h * c_pad) * 2   # weights (bf16)
                      + (2 * h + c_pad) * 4                 # biases (f32)
                      + n_pad * c_pad * 4)                  # output (f32)

    out = pl.pallas_call(
        _ffnn3_kernel,
        out_shape=jax.ShapeDtypeStruct((n_pad, c_pad), jnp.float32),
        grid=(n_pad // tm,),
        in_specs=[
            pl.BlockSpec((tm, din), lambda i: (i, 0)),
            wspec, wspec, wspec, wspec, wspec, wspec,
        ],
        out_specs=pl.BlockSpec((tm, c_pad), lambda i: (i, 0)),
        compiler_params=pltpu.CompilerParams(
            dimension_semantics=("parallel",),
            vmem_limit_bytes=hw["vmem_limit"],
        ),
        cost_estimate=pl.CostEstimate(flops=flops, transcendentals=0,
                                      bytes_accessed=bytes_accessed),
    )(xp,
      w1.astype(jnp.bfloat16), b1.reshape(1, -1).astype(jnp.float32),
      w2.astype(jnp.bfloat16), b2.reshape(1, -1).astype(jnp.float32),
      w3p.astype(jnp.bfloat16), b3p.reshape(1, -1).astype(jnp.float32))
    return out[:n, :c]


# ----------------------------------------------------------------------------
# Model configuration & deterministic parameter initialization
# ----------------------------------------------------------------------------
BUCKET_BINS = [0, 1, 2, 3, 4, 5, 6, 7, 8, 9, 10, 15, 20, 25, 30, 50, 80]


def init_params(key, cfg):
    keys = jax.random.split(key, 20)
    k = iter(keys)

    def w(shape, kk):
        return (0.02 * jax.random.normal(kk, shape)).astype(jnp.float32)

    p = {}
    # TODO(synk): BertModel.from_pretrained has no Pallas/checkpoint-free equivalent;
    # replaced by a deterministic synthetic encoder (embedding + tanh(linear)).
    p["bert_tok_emb"] = w((cfg["bert_vocab"], cfg["bert_dim"]), next(k))
    p["bert_enc_w"] = w((cfg["bert_dim"], cfg["bert_dim"]), next(k))
    p["bert_enc_b"] = jnp.zeros((cfg["bert_dim"],), jnp.float32)

    p["pos_embed"] = w((cfg["pos_vocab_len"], cfg["pos_dim"]), next(k))
    p["span_width_emb"] = w((len(BUCKET_BINS), cfg["span_width_dim"]), next(k))
    p["rel_dis_emb"] = w((len(BUCKET_BINS), cfg["pair_width_dim"]), next(k))
    p["dep_dis_emb"] = w((cfg["dis_vocab_len"], cfg["dep_dis_dim"]), next(k))

    span_dim = cfg["bert_dim"] * 2 + cfg["pos_dim"] * 2 + cfg["span_width_dim"]
    pair_dim = span_dim * 2 + cfg["pair_width_dim"] + cfg["dep_dis_dim"]
    H = cfg["hidden_dim"]

    p["span_ffnn"] = dict(
        w1=w((span_dim, H), next(k)), b1=jnp.zeros((H,), jnp.float32),
        w2=w((H, H), next(k)), b2=jnp.zeros((H,), jnp.float32),
        w3=w((H, cfg["span_label_class"]), next(k)),
        b3=jnp.zeros((cfg["span_label_class"],), jnp.float32),
    )
    p["pair_ffnn"] = dict(
        w1=w((pair_dim, H), next(k)), b1=jnp.zeros((H,), jnp.float32),
        w2=w((H, H), next(k)), b2=jnp.zeros((H,), jnp.float32),
        w3=w((H, cfg["senti_label_class"]), next(k)),
        b3=jnp.zeros((cfg["senti_label_class"],), jnp.float32),
    )
    return p, span_dim, pair_dim


def _bucket_id(width):
    return max(ix for ix, v in enumerate(BUCKET_BINS) if width >= v)


def enumerate_span_indices(batch_max_len, max_span_len):
    span_indices = []
    max_window = min(batch_max_len, max_span_len)
    for window in range(1, max_window + 1):
        for start in range(0, batch_max_len - window + 1):
            span_indices.append((start, start + window - 1))
    return span_indices


# ----------------------------------------------------------------------------
# STABSA forward
# ----------------------------------------------------------------------------
def stabsa_forward(params, cfg,
                   bert_input_id, attention_mask, token_type_ids,
                   bert_subword_mask_matrix, first_subword_seq,
                   pos_id, sentence_len, word_len, dep_dis,
                   span_pruned_threshold=0.5):
    B = bert_input_id.shape[0]
    batch_max_len = int(max(sentence_len))

    # --- synthetic BERT encoder (deterministic) -----------------------------
    emb = params["bert_tok_emb"][bert_input_id]                      # (B, S_bert, D)
    last_hidden = jnp.tanh(emb @ params["bert_enc_w"] + params["bert_enc_b"])
    last_hidden = last_hidden * attention_mask[..., None].astype(jnp.float32)

    # --- subword merge: gather mask rows (bf16), fused Pallas matmul + scale ---
    # merged[first_subword_seq] @ hidden == (mask[first_subword_seq]) @ hidden, so
    # gather the S_bert-wide mask rows (cheap) instead of the D-wide merged tensor.
    # The bf16 cast fuses into the gather (one XLA op, half the HBM traffic); it is
    # exact because the subword mask is binary (0/1).
    # TODO(synk): at very large shapes the row gather could be fused into the kernel
    # itself via PrefetchScalarGridSpec + a per-row Element index_map.
    mask_sel = jnp.take_along_axis(
        bert_subword_mask_matrix, first_subword_seq[:, :, None], axis=1
    ).astype(jnp.bfloat16)                                            # (B, S_word, S_bert)

    # Precomputed reciprocal (multiply in the kernel, no divide); padded positions
    # with word_len == 0 map to 0 instead of inf/NaN (guards downstream gathers).
    wl = word_len.astype(jnp.float32)
    inv_wl = jnp.where(wl != 0, 1.0 / wl, 0.0).reshape(B, -1, 1)

    feats = merge_and_scale(mask_sel, last_hidden.astype(jnp.bfloat16), inv_wl)
    # feats: (B, S_word, D) bf16 — span/pair features are built directly in bf16.

    pos_features = params["pos_embed"][pos_id].astype(jnp.bfloat16)   # (B, S_word, pos_dim)

    # --- span representation --------------------------------------------------
    span_indices = enumerate_span_indices(batch_max_len, cfg["max_span_len"])
    s0 = jnp.array([s[0] for s in span_indices], jnp.int32)
    s1 = jnp.array([s[1] for s in span_indices], jnp.int32)
    width_ids = jnp.array([_bucket_id(abs(s[1] - s[0] + 1)) for s in span_indices],
                          jnp.int32)
    n_span = len(span_indices)

    f0 = feats[:, s0, :]
    f1 = feats[:, s1, :]
    p0 = pos_features[:, s0, :]
    p1 = pos_features[:, s1, :]
    w_em = jnp.broadcast_to(params["span_width_emb"][width_ids].astype(jnp.bfloat16)[None],
                            (B, n_span, cfg["span_width_dim"]))
    span_features = jnp.concatenate([f0, f1, p0, p1, w_em], axis=-1)  # (B, Nspan, span_dim) bf16
    span_dim = span_features.shape[-1]

    # --- span FFNN (Pallas) ---------------------------------------------------
    sp = params["span_ffnn"]
    span_probability = ffnn3(span_features.reshape(-1, span_dim),
                             sp["w1"], sp["b1"], sp["w2"], sp["b2"], sp["w3"], sp["b3"]
                             ).reshape(B, n_span, cfg["span_label_class"])

    # --- pruned target / opinion (top-k, glue) --------------------------------
    nz = int(batch_max_len * span_pruned_threshold)
    target_indices = jax.lax.top_k(span_probability[:, :, 1], nz)[1]   # (B, nz)
    opinion_indices = jax.lax.top_k(span_probability[:, :, 2], nz)[1]  # (B, nz)

    # --- target-opinion pair representation -----------------------------------
    # itertools.product order: repeat targets, tile opinions
    span1_ids = jnp.repeat(target_indices, nz, axis=1)                 # (B, P)
    span2_ids = jnp.tile(opinion_indices, (1, nz))                     # (B, P)
    P = nz * nz

    span1_feat = jnp.take_along_axis(span_features, span1_ids[:, :, None], axis=1)
    span2_feat = jnp.take_along_axis(span_features, span2_ids[:, :, None], axis=1)

    span_idx_arr = jnp.stack([s0, s1], axis=-1)                        # (Nspan, 2)
    ab = span_idx_arr[span1_ids]                                       # (B, P, 2)
    cd = span_idx_arr[span2_ids]                                       # (B, P, 2)
    a, b_ = ab[..., 0], ab[..., 1]
    c, d = cd[..., 0], cd[..., 1]

    rel_dis = jnp.minimum(jnp.abs(b_ - c), jnp.abs(a - d))             # (B, P)
    bins = jnp.array(BUCKET_BINS, jnp.int32)
    rel_dis_id = jnp.sum(rel_dis[..., None] >= bins, axis=-1) - 1
    rel_dis_emb = params["rel_dis_emb"][rel_dis_id]                    # (B, P, pair_width_dim)

    # --- dep-distance window minimum: min over dep_dis[b, a:b+1, c:d+1] --------
    # Span widths are bounded by L = max_span_len, so precompute 2-D sliding-window
    # minima for every (height, width) <= L with dense vectorized shifts (no gathers),
    # then each pair needs a SINGLE scalar lookup winmin[b, h-1, w-1, a, c] instead of
    # the previous (B, P, L, L) element gather.
    # TODO(synk): for very long sentences switch to a power-of-two sparse table or a
    # dedicated Pallas kernel.
    L = max(1, min(batch_max_len, cfg["max_span_len"]))
    Sr, Sc = dep_dis.shape[1], dep_dis.shape[2]
    big = jnp.array(jnp.iinfo(dep_dis.dtype).max, dep_dis.dtype)
    cw = dep_dis
    col_mins = [cw]
    for w in range(2, L + 1):
        shifted = jnp.concatenate(
            [dep_dis[:, :, w - 1:], jnp.full((B, Sr, w - 1), big, dep_dis.dtype)],
            axis=-1)
        cw = jnp.minimum(cw, shifted)
        col_mins.append(cw)
    col_mins = jnp.stack(col_mins, axis=1)            # (B, L, Sr, Sc): [b, w-1, i, c]
    rw = col_mins
    row_mins = [rw]
    for h in range(2, L + 1):
        shifted = jnp.concatenate(
            [col_mins[:, :, h - 1:, :], jnp.full((B, L, h - 1, Sc), big, dep_dis.dtype)],
            axis=2)
        rw = jnp.minimum(rw, shifted)
        row_mins.append(rw)
    winmin = jnp.stack(row_mins, axis=1)              # (B, L, L, Sr, Sc): [b, h-1, w-1, a, c]

    h_id = (b_ - a).astype(jnp.int32)                 # height - 1, in [0, L)
    w_id = (d - c).astype(jnp.int32)                  # width  - 1, in [0, L)
    bcol = jnp.arange(B, dtype=jnp.int32)[:, None]
    dep_min = winmin[bcol, h_id, w_id, a, c]          # (B, P) — one lookup per pair
    dep_dis_emb = params["dep_dis_emb"][dep_min]      # (B, P, dep_dis_dim)

    pair_features = jnp.concatenate(
        [span1_feat, span2_feat,
         rel_dis_emb.astype(jnp.bfloat16), dep_dis_emb.astype(jnp.bfloat16)],
        axis=-1)                                      # (B, P, pair_dim) bf16
    pair_dim = pair_features.shape[-1]

    # --- pair FFNN (Pallas) ----------------------------------------------------
    pp = params["pair_ffnn"]
    pair_probability = ffnn3(pair_features.reshape(-1, pair_dim),
                             pp["w1"], pp["b1"], pp["w2"], pp["b2"], pp["w3"], pp["b3"]
                             ).reshape(B, P, cfg["senti_label_class"])

    pair_indices = jnp.stack([a, b_, c, d], axis=-1)                   # (B, P, 4)
    return span_probability, span_indices, pair_probability, pair_indices


# ----------------------------------------------------------------------------
if __name__ == "__main__":
    cfg = dict(
        bert_vocab=50, bert_dim=32, pos_dim=8, span_width_dim=8, max_span_len=4,
        hidden_dim=32, span_label_class=3, pair_width_dim=8, dep_dis_dim=8,
        senti_label_class=4, pos_vocab_len=10, dis_vocab_len=6,
    )
    B, S_bert, S_word = 2, 12, 8

    key = jax.random.PRNGKey(0)
    kp, k1, k2, k3, k4, k5, k6 = jax.random.split(key, 7)
    params, span_dim, pair_dim = init_params(kp, cfg)

    bert_input_id = jax.random.randint(k1, (B, S_bert), 0, cfg["bert_vocab"], jnp.int32)
    attention_mask = jnp.ones((B, S_bert), jnp.int32)
    token_type_ids = jnp.zeros((B, S_bert), jnp.int32)
    # Binary subword mask (as in the real model) — bf16 cast of 0/1 values is exact.
    bert_subword_mask_matrix = (jax.random.uniform(k2, (B, S_bert, S_bert)) < 0.5
                                ).astype(jnp.float32)
    first_subword_seq = jnp.broadcast_to(jnp.arange(S_word, dtype=jnp.int32), (B, S_word))
    pos_id = jax.random.randint(k3, (B, S_word), 0, cfg["pos_vocab_len"], jnp.int32)
    sentence_len = [S_word, S_word]
    word_len = 1.0 + jax.random.uniform(k4, (B, S_word), jnp.float32) * 2.0
    dep_dis = jax.random.randint(k5, (B, S_word, S_word), 0, cfg["dis_vocab_len"], jnp.int32)

    span_prob, span_idx, pair_prob, pair_idx = stabsa_forward(
        params, cfg, bert_input_id, attention_mask, token_type_ids,
        bert_subword_mask_matrix, first_subword_seq, pos_id, sentence_len,
        word_len, dep_dis)

    jax.block_until_ready((span_prob, pair_prob, pair_idx))
    assert span_prob.shape == (B, len(span_idx), cfg["span_label_class"])
    assert pair_prob.shape[0] == B and pair_prob.shape[-1] == cfg["senti_label_class"]
    print("KERNEL_OK")
</pallas_src>

<mosaic_0001>
module attributes {stable_mosaic.version = 11 : i64} {
  func.func @_merge_rows_kernel(%arg0: i32, %arg1: i32, %arg2: memref<1x8x12xbf16, #tpu.memory_space<vmem>>, %arg3: memref<1x12x32xbf16, #tpu.memory_space<vmem>>, %arg4: memref<1x8x1xf32, #tpu.memory_space<vmem>>, %arg5: memref<1x8x32xbf16, #tpu.memory_space<vmem>>) attributes {dimension_semantics = [#tpu.dimension_semantics<parallel>, #tpu.dimension_semantics<parallel>], iteration_bounds = array<i64: 2, 1>, scalar_prefetch = 0 : i64, scratch_operands = 0 : i64, tpu.core_type = #tpu.core_type<tc>, window_params = [{transform_indices = @transform_0, window_bounds = array<i64: 1, 8, 12>}, {transform_indices = @transform_1, window_bounds = array<i64: 1, 12, 32>}, {transform_indices = @transform_2, window_bounds = array<i64: 1, 8, 1>}, {transform_indices = @transform_3, window_bounds = array<i64: 1, 8, 32>}]} {
    %c0 = arith.constant 0 : index
    %c0_0 = arith.constant 0 : index
    %c0_1 = arith.constant 0 : index
    %0 = vector.load %arg2[%c0, %c0_0, %c0_1] : memref<1x8x12xbf16, #tpu.memory_space<vmem>>, vector<1x8x12xbf16>
    %1 = vector.shape_cast %0 : vector<1x8x12xbf16> to vector<8x12xbf16>
    %c0_2 = arith.constant 0 : index
    %c0_3 = arith.constant 0 : index
    %c0_4 = arith.constant 0 : index
    %2 = vector.load %arg3[%c0_2, %c0_3, %c0_4] : memref<1x12x32xbf16, #tpu.memory_space<vmem>>, vector<1x12x32xbf16>
    %3 = vector.shape_cast %2 : vector<1x12x32xbf16> to vector<12x32xbf16>
    %cst = arith.constant dense<0.000000e+00> : vector<8x32xf32>
    %4 = tpu.matmul %1, %3, %cst {dimension_numbers = #tpu.dot_dimension_numbers<[1], [0], [0], [1], [0, 0, 1, 1], [], []>} : vector<8x12xbf16>, vector<12x32xbf16>, vector<8x32xf32> -> vector<8x32xf32>
    %c0_5 = arith.constant 0 : index
    %c0_6 = arith.constant 0 : index
    %c0_7 = arith.constant 0 : index
    %5 = vector.load %arg4[%c0_5, %c0_6, %c0_7] : memref<1x8x1xf32, #tpu.memory_space<vmem>>, vector<1x8x1xf32>
    %6 = vector.shape_cast %5 : vector<1x8x1xf32> to vector<8x1xf32>
    %7 = vector.broadcast %6 : vector<8x1xf32> to vector<8x32xf32>
    %8 = arith.mulf %4, %7 : vector<8x32xf32>
    %9 = arith.truncf %8 : vector<8x32xf32> to vector<8x32xbf16>
    %c0_8 = arith.constant 0 : index
    %c0_9 = arith.constant 0 : index
    %c0_10 = arith.constant 0 : index
    %10 = vector.load %arg5[%c0_8, %c0_9, %c0_10] : memref<1x8x32xbf16, #tpu.memory_space<vmem>>, vector<1x8x32xbf16>
    %11 = vector.shape_cast %10 : vector<1x8x32xbf16> to vector<8x32xbf16>
    %12 = vector.shape_cast %9 : vector<8x32xbf16> to vector<1x8x32xbf16>
    tpu.vector_store %arg5[%c0_8, %c0_9, %c0_10], %12 {strides = array<i32>} : memref<1x8x32xbf16, #tpu.memory_space<vmem>>, vector<1x8x32xbf16>,
    return
  }
  func.func @transform_0(%arg0: i32, %arg1: i32) -> (i32, i32, i32) {
    %c0_i32 = arith.constant 0 : i32
    %c0_i32_0 = arith.constant 0 : i32
    return %arg0, %arg1, %c0_i32 : i32, i32, i32
  }
  func.func @transform_1(%arg0: i32, %arg1: i32) -> (i32, i32, i32) {
    %c0_i32 = arith.constant 0 : i32
    %c0_i32_0 = arith.constant 0 : i32
    %c0_i32_1 = arith.constant 0 : i32
    return %arg0, %c0_i32, %c0_i32_0 : i32, i32, i32
  }
  func.func @transform_2(%arg0: i32, %arg1: i32) -> (i32, i32, i32) {
    %c0_i32 = arith.constant 0 : i32
    %c0_i32_0 = arith.constant 0 : i32
    return %arg0, %arg1, %c0_i32 : i32, i32, i32
  }
  func.func @transform_3(%arg0: i32, %arg1: i32) -> (i32, i32, i32) {
    %c0_i32 = arith.constant 0 : i32
    %c0_i32_0 = arith.constant 0 : i32
    return %arg0, %arg1, %c0_i32 : i32, i32, i32
  }
}

</mosaic_0001>

<llo_original>
// kernel: tpu_custom_call.1
$region0: #{tpu_custom_call.1}
  #allocation0 [shape = 'u32[]', space=smem, size = 0x4, offset = 0x4, fixed_abs, tag = 'smem constant byte address 0x4 - core index']
  #allocation1 [shape = 'u32[144,128]{1,0:T(1,128)}', space=vmem, size = 0x12000, scoped, tag = 'internal scratch']
  %s0 = inlined_call_operand.hbm [shape: bf16[2,8,12], index: 0, kind: input, shape index: {}]
  %s1 = inlined_call_operand.hbm [shape: bf16[2,12,32], index: 1, kind: input, shape index: {}]
  %s2 = inlined_call_operand.hbm [shape: f32[2,8,1], index: 2, kind: input, shape index: {}]
  %s3 = inlined_call_operand.hbm [shape: bf16[2,8,32], index: 3, kind: output, shape index: {}]
  %s4 = sld [smem:[#allocation0]]
  $region57: #{tpu_custom_call.1} parent=0
    _
  %s6 = ssub.s32 1, %s4
  %s7 = scalar_select 0, %s6, %s4
  $region1: #{tpu_custom_call.1} parent=0
    #allocation2 [shape = 'u8[4096]{0}', space=vmem, size = 0x1000, scoped, tag = 'input window, operand 0']
    #allocation3 [shape = 's32[2]{0}', space=sflag, size = 0x8, scoped, tag = 'scoped memory for tpu_custom_call.1']
    #allocation4 [shape = 's32[2]{0}', space=sflag, size = 0x8, scoped, tag = 'scoped memory for tpu_custom_call.1']
    #allocation5 [shape = 'u8[8192]{0}', space=vmem, size = 0x2000, scoped, tag = 'input window, operand 1']
    #allocation6 [shape = 's32[2]{0}', space=sflag, size = 0x8, scoped, tag = 'scoped memory for tpu_custom_call.1']
    #allocation7 [shape = 'u8[8192]{0}', space=vmem, size = 0x2000, scoped, tag = 'input window, operand 2']
    #allocation8 [shape = 'u8[4096]{0}', space=vmem, size = 0x1000, scoped, tag = 'output window, operand 0']
    %8 = vsyncpa [#allocation3], 0
    %s9 = scalar_lea.sflag [#allocation3], 1
    %10 = vsyncpa %s9, 0
    %11 = vsyncpa [#allocation6], 0
    %s12 = scalar_lea.sflag [#allocation6], 1
    %13 = vsyncpa %s12, 0
    %14 = vsyncpa [#allocation4], 0
    %s15 = scalar_lea.sflag [#allocation4], 1
    %16 = vsyncpa %s15, 0
    loop: start=0, step=1, limit=4
    $region2: #{tpu_custom_call.1} parent=1 // loop_pre_header
      _
    $region3: #{tpu_custom_call.1} parent=1 // loop_header
      %s18 = sphi 0, %s22
      %p19 = scmp.ge.s32.totalorder %s18, 4
      %s25 = sphi 0, %s37
      %s26 = sphi 0, %s33
      %s27 = sphi 0, %s25
      %s28 = sphi 0, %s26
      %s29 = sphi 0, %s27
      %s30 = sphi 0, %s28
      %s42 = sphi 0, %s44
      %s45 = sphi 0, %s42
      %s46 = sphi 0, %s45
      %s62 = sphi 0, %s46
      %s68 = sphi 0, %s70
      %s71 = sphi 0, %s68
      %s72 = sphi 0, %s71
      %s88 = sphi 0, %s72
      %s96 = sphi 0, %s98
      %s99 = sphi 0, %s96
      %s100 = sphi 0, %s99
      %s116 = sphi 0, %s100
      %s124 = sphi 0, %s126
      %s127 = sphi 0, %s124
      %s128 = sphi 0, %s127
      %s144 = sphi 0, %s128
    $region4: #{tpu_custom_call.1} parent=1 // loop_header_branch
      %21 = sbr.rel (%p19) target = $region8
    $region5: #{tpu_custom_call.1} parent=1 // loop_body
      %s23 = ssub.s32 %s18, 1
      %s24 = ssub.s32 %s18, 2
      %s31 = sadd.s32 1, %s26
      %p32 = scmp.ge.s32.totalorder %s31, 1
      %s33 = scalar_select %p32, 0, %s31
      %s34 = sadd.s32 1, %s25
      %s35 = scalar_select %p32, %s34, %s25
      %p36 = scmp.ge.s32.totalorder %s35, 2
      %s37 = scalar_select %p36, 0, %s35
      %s38 = ssub.s32 %s25, %s37
      %s39 = ssub.s32 %s26, %s33
      %s40 = sor.u32 %s38, %s39
      %p41 = scmp.eq.s32.totalorder %s40, 0
      %s43 = sadd.s32 %s42, 1
      %s44 = scalar_select %p41, %s42, %s43
      %p47 = pneg %p41
      %p48 = scmp.eq.s32.totalorder %s18, 1
      %p49 = por %p47, %p48
      %p50 = scmp.ne.s32.totalorder %s42, %s45
      %p51 = scmp.eq.s32.totalorder %s18, 0
      %p52 = por %p50, %p51
      %p53 = scmp.ne.s32.totalorder %s42, %s45
      %p54 = scmp.eq.s32.totalorder %s23, 1
      %p55 = por %p53, %p54
      %p56 = scmp.ne.s32.totalorder %s45, %s46
      %p57 = scmp.eq.s32.totalorder %s23, 0
      %p58 = por %p56, %p57
      %p59 = scmp.ne.s32.totalorder %s45, %s46
      %p60 = scmp.eq.s32.totalorder %s24, 1
      %p61 = por %p59, %p60
      %p63 = scmp.ne.s32.totalorder %s46, %s62
      %p64 = scmp.eq.s32.totalorder %s24, 0
      %p65 = por %p63, %p64
      %s66 = ssub.s32 %s25, %s37
      %p67 = scmp.eq.s32.totalorder %s66, 0
      %s69 = sadd.s32 %s68, 1
      %s70 = scalar_select %p67, %s68, %s69
      %p73 = pneg %p67
      %p74 = scmp.eq.s32.totalorder %s18, 1
      %p75 = por %p73, %p74
      %p76 = scmp.ne.s32.totalorder %s68, %s71
      %p77 = scmp.eq.s32.totalorder %s18, 0
      %p78 = por %p76, %p77
      %p79 = scmp.ne.s32.totalorder %s68, %s71
      %p80 = scmp.eq.s32.totalorder %s23, 1
      %p81 = por %p79, %p80
      %p82 = scmp.ne.s32.totalorder %s71, %s72
      %p83 = scmp.eq.s32.totalorder %s23, 0
      %p84 = por %p82, %p83
      %p85 = scmp.ne.s32.totalorder %s71, %s72
      %p86 = scmp.eq.s32.totalorder %s24, 1
      %p87 = por %p85, %p86
      %p89 = scmp.ne.s32.totalorder %s72, %s88
      %p90 = scmp.eq.s32.totalorder %s24, 0
      %p91 = por %p89, %p90
      %s92 = ssub.s32 %s25, %s37
      %s93 = ssub.s32 %s26, %s33
      %s94 = sor.u32 %s92, %s93
      %p95 = scmp.eq.s32.totalorder %s94, 0
      %s97 = sadd.s32 %s96, 1
      %s98 = scalar_select %p95, %s96, %s97
      %p101 = pneg %p95
      %p102 = scmp.eq.s32.totalorder %s18, 1
      %p103 = por %p101, %p102
      %p104 = scmp.ne.s32.totalorder %s96, %s99
      %p105 = scmp.eq.s32.totalorder %s18, 0
      %p106 = por %p104, %p105
      %p107 = scmp.ne.s32.totalorder %s96, %s99
      %p108 = scmp.eq.s32.totalorder %s23, 1
      %p109 = por %p107, %p108
      %p110 = scmp.ne.s32.totalorder %s99, %s100
      %p111 = scmp.eq.s32.totalorder %s23, 0
      %p112 = por %p110, %p111
      %p113 = scmp.ne.s32.totalorder %s99, %s100
      %p114 = scmp.eq.s32.totalorder %s24, 1
      %p115 = por %p113, %p114
      %p117 = scmp.ne.s32.totalorder %s100, %s116
      %p118 = scmp.eq.s32.totalorder %s24, 0
      %p119 = por %p117, %p118
      %s120 = ssub.s32 %s25, %s37
      %s121 = ssub.s32 %s26, %s33
      %s122 = sor.u32 %s120, %s121
      %p123 = scmp.eq.s32.totalorder %s122, 0
      %s125 = sadd.s32 %s124, 1
      %s126 = scalar_select %p123, %s124, %s125
      %p129 = pneg %p123
      %p130 = scmp.eq.s32.totalorder %s18, 1
      %p131 = por %p129, %p130
      %p132 = scmp.ne.s32.totalorder %s124, %s127
      %p133 = scmp.eq.s32.totalorder %s18, 0
      %p134 = por %p132, %p133
      %p135 = scmp.ne.s32.totalorder %s124, %s127
      %p136 = scmp.eq.s32.totalorder %s23, 1
      %p137 = por %p135, %p136
      %p138 = scmp.ne.s32.totalorder %s127, %s128
      %p139 = scmp.eq.s32.totalorder %s23, 0
      %p140 = por %p138, %p139
      %p141 = scmp.ne.s32.totalorder %s127, %s128
      %p142 = scmp.eq.s32.totalorder %s24, 1
      %p143 = por %p141, %p142
      %p145 = scmp.ne.s32.totalorder %s128, %s144
      %p146 = scmp.eq.s32.totalorder %s24, 0
      %p147 = por %p145, %p146
      %p148 = scmp.le.s32.totalorder 1, %s18
      %p149 = scmp.lt.s32.totalorder %s18, 3
      %p150 = pnand %p148, %p149
      %p151 = pneg %p150
      // Predicated region
      $region9: #{tpu_custom_call.1} parent=5 // pred_check
        _
      $region10: #{tpu_custom_call.1} parent=5 // pred_check_branch
        %153 = sbr.rel (%p150) target = $region12
      $region11: #{tpu_custom_call.1} parent=5 // pred_region
        %s154 = ssub.s32 %s18, 1
      $region12: #{tpu_custom_call.1} parent=5 // pred_fallthru
        _
      %p155 = scmp.lt.s32.totalorder %s18, 2
      // Predicated region
      $region13: #{tpu_custom_call.1} parent=5 // pred_check
        %p156 = pneg %p155
      $region14: #{tpu_custom_call.1} parent=5 // pred_check_branch
        %158 = sbr.rel (%p156) target = $region16
      $region15: #{tpu_custom_call.1} parent=5 // pred_region
        // Predicated region
        $region17: #{tpu_custom_call.1} parent=15 // pred_check
          %p159 = pneg %p52
        $region18: #{tpu_custom_call.1} parent=15 // pred_check_branch
          %161 = sbr.rel (%p159) target = $region20
        $region19: #{tpu_custom_call.1} parent=15 // pred_region
          %s162 = sand.u32 %s42, 1
          %s163 = scalar_lea.sflag [#allocation3], %s162
          %s164 = sand.u32 %s42, 1
          %s165 = smul.addr %s164, 4
          %s166 = scalar_lea.vmem [#allocation2], %s165
          %s168 = ssub.s32 64, 64
          %169 = vsyncadd %s163, %s168
          %s170 = sadd.s32 %s26, %s25
          %s171 = smul.addr %s170, 64
          %s172 = scalar_lea.hbm %s0, %s171
          %s174 = sshll.u32 %s166, 4
          %s175 = int_to_ptr.vmem [resolvable:$true] %s174
          %177 = dma.hbm_to_vmem [thread:$0]  %s172, 64, %s175, %s163
        $region20: #{tpu_custom_call.1} parent=15 // pred_fallthru
          _
        // Predicated region
        $region21: #{tpu_custom_call.1} parent=15 // pred_check
          %p178 = pneg %p78
        $region22: #{tpu_custom_call.1} parent=15 // pred_check_branch
          %180 = sbr.rel (%p178) target = $region24
        $region23: #{tpu_custom_call.1} parent=15 // pred_region
          %s181 = sand.u32 %s18, 1
          %s182 = scalar_lea.sflag [#allocation6], %s181
          %s183 = sand.u32 %s68, 1
          %s184 = smul.addr %s183, 8
          %s185 = scalar_lea.vmem [#allocation5], %s184
          %s187 = ssub.s32 128, 128
          %188 = vsyncadd %s182, %s187
          %s189 = smul.addr %s25, 2
          %s190 = smul.addr %s189, 64
          %s191 = scalar_lea.hbm %s1, %s190
          %s192 = sshll.u32 %s185, 4
          %s193 = int_to_ptr.vmem [resolvable:$true] %s192
          %198 = dma.hbm_to_vmem [thread:$0]  %s191, 128, %s193, %s182, 64, 64, 4
        $region24: #{tpu_custom_call.1} parent=15 // pred_fallthru
          _
        // Predicated region
        $region25: #{tpu_custom_call.1} parent=15 // pred_check
          %p199 = pneg %p106
        $region26: #{tpu_custom_call.1} parent=15 // pred_check_branch
          %201 = sbr.rel (%p199) target = $region28
        $region27: #{tpu_custom_call.1} parent=15 // pred_region
          %s202 = sand.u32 %s18, 1
          %s203 = scalar_lea.sflag [#allocation6], %s202
          %s204 = sand.u32 %s96, 1
          %s205 = smul.addr %s204, 8
          %s206 = scalar_lea.vmem [#allocation7], %s205
          %s208 = ssub.s32 128, 128
          %209 = vsyncadd %s203, %s208
          %s210 = sadd.s32 %s26, %s25
          %s211 = smul.addr %s210, 128
          %s212 = scalar_lea.hbm %s2, %s211
          %s214 = sshll.u32 %s206, 4
          %s215 = int_to_ptr.vmem [resolvable:$true] %s214
          %217 = dma.hbm_to_vmem [thread:$0]  %s212, 128, %s215, %s203
        $region28: #{tpu_custom_call.1} parent=15 // pred_fallthru
          _
      $region16: #{tpu_custom_call.1} parent=5 // pred_fallthru
        _
      %p218 = scmp.le.s32.totalorder 1, %s18
      %p219 = scmp.lt.s32.totalorder %s18, 3
      %p220 = pnand %p218, %p219
      %p221 = pneg %p220
      // Predicated region
      $region29: #{tpu_custom_call.1} parent=5 // pred_check
        _
      $region30: #{tpu_custom_call.1} parent=5 // pred_check_branch
        %223 = sbr.rel (%p220) target = $region32
      $region31: #{tpu_custom_call.1} parent=5 // pred_region
        %s224 = ssub.s32 %s18, 1
        %s225 = sand.u32 %s45, 1
        %s226 = scalar_lea.sflag [#allocation3], %s225
        %s227 = sand.u32 %s45, 1
        %s228 = smul.addr %s227, 4
        %s229 = scalar_lea.vmem [#allocation2], %s228
        // Predicated region
        $region33: #{tpu_custom_call.1} parent=31 // pred_check
          %p230 = pneg %p58
        $region34: #{tpu_custom_call.1} parent=31 // pred_check_branch
          %232 = sbr.rel (%p230) target = $region36
        $region35: #{tpu_custom_call.1} parent=31 // pred_region
          %233 = dma.done %s226, 64
        $region36: #{tpu_custom_call.1} parent=31 // pred_fallthru
          _
        %s234 = sand.u32 %s23, 1
        %s235 = scalar_lea.sflag [#allocation6], %s234
        %s236 = sand.u32 %s71, 1
        %s237 = smul.addr %s236, 8
        %s238 = scalar_lea.vmem [#allocation5], %s237
        // Predicated region
        $region37: #{tpu_custom_call.1} parent=31 // pred_check
          %p239 = pneg %p84
        $region38: #{tpu_custom_call.1} parent=31 // pred_check_branch
          %241 = sbr.rel (%p239) target = $region40
        $region39: #{tpu_custom_call.1} parent=31 // pred_region
          %242 = dma.done %s235, 128
        $region40: #{tpu_custom_call.1} parent=31 // pred_fallthru
          _
        %s243 = sand.u32 %s23, 1
        %s244 = scalar_lea.sflag [#allocation6], %s243
        %s245 = sand.u32 %s99, 1
        %s246 = smul.addr %s245, 8
        %s247 = scalar_lea.vmem [#allocation7], %s246
        // Predicated region
        $region41: #{tpu_custom_call.1} parent=31 // pred_check
          %p248 = pneg %p112
        $region42: #{tpu_custom_call.1} parent=31 // pred_check_branch
          %250 = sbr.rel (%p248) target = $region44
        $region43: #{tpu_custom_call.1} parent=31 // pred_region
          %251 = dma.done %s244, 128
        $region44: #{tpu_custom_call.1} parent=31 // pred_fallthru
          _
        %s252 = sand.u32 %s45, 1
        %s253 = scalar_lea.sflag [#allocation3], %s252
        %s254 = sand.u32 %s45, 1
        %s255 = smul.addr %s254, 4
        %s256 = scalar_lea.vmem [#allocation2], %s255
        %p257 = pneg %p58
        %p258 = pneg %p55
        %s259 = sand.u32 %s23, 1
        %s260 = scalar_lea.sflag [#allocation6], %s259
        %s261 = sand.u32 %s71, 1
        %s262 = smul.addr %s261, 8
        %s263 = scalar_lea.vmem [#allocation5], %s262
        %p264 = pneg %p84
        %p265 = pneg %p81
        %s266 = sand.u32 %s23, 1
        %s267 = scalar_lea.sflag [#allocation6], %s266
        %s268 = sand.u32 %s99, 1
        %s269 = smul.addr %s268, 8
        %s270 = scalar_lea.vmem [#allocation7], %s269
        %p271 = pneg %p112
        %p272 = pneg %p109
        %p273 = pneg %p140
        %p274 = pneg %p137
        %s275 = sand.u32 %s127, 1
        %s276 = scalar_lea.sflag [#allocation4], %s275
        %s277 = sand.u32 %s127, 1
        %s278 = smul.addr %s277, 4
        %s279 = scalar_lea.vmem [#allocation8], %s278
        %v281 = vld [vmem:[%s229] sm:$0xf]
        %v282 = vld [vmem:[%s238] sm:$0xf]
        %v283 = vld [vmem:[%s238 + $0x4] sm:$0x3]
        %v286 = vunpack.c.l.b16 %v282
        %v287 = vunpack.c.l.b16 %v283
        %v288 = vpack.c.b16 %v287, %v286
        %vm289 = vcmask 97280
        %v291 = vsel %vm289, %v281, 0
        %vm293 = vcmask 1045504
        %v295 = vsel %vm293, %v288, 0
        %297 = vmatprep.subr.bf16.mxu0 0
        %298 = vmatpush1.bf16.msra.mxu0 %v295
        %299 = vmatprep.subr.bf16.mxu0 0
        %300 = vmatpush1.bf16.msra.mxu0 0
        %301 = vmatprep.subr.bf16.mxu0 0
        %302 = vmatpush1.bf16.msra.mxu0 0
        %303 = vmatprep.subr.bf16.mxu0 0
        %304 = vmatpush1.bf16.msra.mxu0 0
        %305 = vmatprep.subr.bf16.mxu0 0
        %306 = vmatpush1.bf16.msra.mxu0 0
        %307 = vmatprep.subr.bf16.mxu0 0
        %308 = vmatpush1.bf16.msra.mxu0 0
        %309 = vmatprep.subr.bf16.mxu0 0
        %310 = vmatpush1.bf16.msra.mxu0 0
        %311 = vmatprep.subr.bf16.mxu0 0
        %312 = vmatpush1.bf16.msra.mxu0 0
        %313 = vmatprep.subr.bf16.mxu0 0
        %314 = vmatpush1.bf16.msra.mxu0 0
        %315 = vmatprep.subr.bf16.mxu0 0
        %316 = vmatpush1.bf16.msra.mxu0 0
        %317 = vmatprep.subr.bf16.mxu0 0
        %318 = vmatpush1.bf16.msra.mxu0 0
        %319 = vmatprep.subr.bf16.mxu0 0
        %320 = vmatpush1.bf16.msra.mxu0 0
        %321 = vmatprep.subr.bf16.mxu0 0
        %322 = vmatpush1.bf16.msra.mxu0 0
        %323 = vmatprep.subr.bf16.mxu0 0
        %324 = vmatpush1.bf16.msra.mxu0 0
        %325 = vmatprep.subr.bf16.mxu0 0
        %326 = vmatpush1.bf16.msra.mxu0 0
        %327 = vmatprep.subr.bf16.mxu0 0
        %328 = vmatpush1.bf16.msra.mxu0 0
        %329 = vmatprep.mubr.bf16.mxu0 0
        %330 = vmatmul.mubr.bf16.gmra.mrb[0].mxu0 %v291
        %v331 = vpop.f32.mrb[0].mxu0
        %v332 = vadd.f32 0.0, %v331
        %v333 = vpop.f32.mrb[0].mxu0
        %v334 = vpop.f32.mrb[0].mxu0
        %v335 = vpop.f32.mrb[0].mxu0
        %336 = vdwg.mxu0
        %v337 = vld [vmem:[%s247] sm:$0xff]
        %339 = vset.pattern.permute.xlu0 0
        %340 = vperm.xlu0 %339, %v337
        %v341 = vpop.permute.xlu0 %340
        %v343 = vmul.f32 %v332, %v341
        %v344 = vpack.c.bf16 %v343, %v343
        %vm345 = vcmask 257024
        %346 = vst.msk [vmem:[%s279] sm:$0xf] %vm345, %v344
        %s347 = sand.u32 %s127, 1
        %s348 = scalar_lea.sflag [#allocation4], %s347
        %s349 = sand.u32 %s127, 1
        %s350 = smul.addr %s349, 4
        %s351 = scalar_lea.vmem [#allocation8], %s350
        // Predicated region
        $region45: #{tpu_custom_call.1} parent=31 // pred_check
          %p352 = pneg %p137
        $region46: #{tpu_custom_call.1} parent=31 // pred_check_branch
          %354 = sbr.rel (%p352) target = $region48
        $region47: #{tpu_custom_call.1} parent=31 // pred_region
          %s356 = ssub.s32 64, 64
          %357 = vsyncadd %s348, %s356
          %s358 = sadd.s32 %s28, %s27
          %s359 = smul.addr %s358, 64
          %s360 = scalar_lea.hbm %s3, %s359
          %s362 = sshll.u32 %s351, 4
          %s363 = int_to_ptr.vmem [resolvable:$true] %s362
          %365 = dma.vmem_to_hbm [thread:$0]  %s363, 64, %s360, %s348
        $region48: #{tpu_custom_call.1} parent=31 // pred_fallthru
          _
      $region32: #{tpu_custom_call.1} parent=5 // pred_fallthru
        _
      %p366 = scmp.le.s32.totalorder 2, %s18
      // Predicated region
      $region49: #{tpu_custom_call.1} parent=5 // pred_check
        %p367 = pneg %p366
      $region50: #{tpu_custom_call.1} parent=5 // pred_check_branch
        %369 = sbr.rel (%p367) target = $region52
      $region51: #{tpu_custom_call.1} parent=5 // pred_region
        %s370 = ssub.s32 %s18, 2
        // Predicated region
        $region53: #{tpu_custom_call.1} parent=51 // pred_check
          %p371 = pneg %p143
        $region54: #{tpu_custom_call.1} parent=51 // pred_check_branch
          %373 = sbr.rel (%p371) target = $region56
        $region55: #{tpu_custom_call.1} parent=51 // pred_region
          %s374 = sand.u32 %s128, 1
          %s375 = scalar_lea.sflag [#allocation4], %s374
          %s376 = sand.u32 %s128, 1
          %s377 = smul.addr %s376, 4
          %s378 = scalar_lea.vmem [#allocation8], %s377
          %379 = dma.done %s375, 64
        $region56: #{tpu_custom_call.1} parent=51 // pred_fallthru
          _
      $region52: #{tpu_custom_call.1} parent=5 // pred_fallthru
        _
    $region6: #{tpu_custom_call.1} parent=1 // loop_footer
      %s22 = sadd.s32 1, %s18
    $region7: #{tpu_custom_call.1} parent=1 // loop_footer_branch
      %17 = sbr.rel target = $region3
    $region8: #{tpu_custom_call.1} parent=1 // loop_exit
      _
    %380 = vsyncpa [#allocation3], 1
    %s381 = scalar_lea.sflag [#allocation3], 1
    %382 = vsyncpa %s381, 1
    %383 = vsyncpa [#allocation6], 1
    %s384 = scalar_lea.sflag [#allocation6], 1
    %385 = vsyncpa %s384, 1
    %386 = vsyncpa [#allocation4], 1
    %s387 = scalar_lea.sflag [#allocation4], 1
    %388 = vsyncpa %s387, 1

</llo_original>
